<compile_context>
chip_gen: v7x
topology: tpu7x:2x2x1
jax: 0.10.0
libtpu: 0.0.40
codegen_flags: <defaults>
</compile_context>

<pallas_src>
import math
import functools

import jax
import jax.numpy as jnp
from jax.experimental import pallas as pl
from jax.experimental.pallas import tpu as pltpu

NEG_SLOPE = 0.1  # LeakyReLU(0.1); jnp.maximum(y, s*y) is valid only for 0 <= s < 1.


# ----------------------------- kernels ------------------------------------- #

def _fc_kernel_single_k(x_ref, w_ref, b_ref, o_ref):
    """Whole K resident in VMEM: one dot + fused bias + LeakyReLU per (i, j) tile."""
    y = jnp.dot(x_ref[...], w_ref[...], preferred_element_type=jnp.float32)
    y = y + b_ref[...]                      # (1, tn) bias broadcast over rows, f32
    y = jnp.maximum(y, NEG_SLOPE * y)       # LeakyReLU(0.1)
    o_ref[...] = y.astype(o_ref.dtype)


def _fc_kernel_k_tiled(x_ref, w_ref, b_ref, o_ref, acc_ref):
    """K tiled as the innermost ("arbitrary") reduction axis with an f32 accumulator."""
    k = pl.program_id(2)

    @pl.when(k == 0)
    def _():
        acc_ref[...] = jnp.zeros_like(acc_ref)

    acc_ref[...] += jnp.dot(
        x_ref[...], w_ref[...], preferred_element_type=jnp.float32
    )

    @pl.when(k == pl.num_programs(2) - 1)
    def _():
        y = acc_ref[...] + b_ref[...]
        y = jnp.maximum(y, NEG_SLOPE * y)   # LeakyReLU(0.1)
        o_ref[...] = y.astype(o_ref.dtype)


# ----------------------------- helpers -------------------------------------- #

def _round_up(x, m):
    return (x + m - 1) // m * m


def _sublane(dtype):
    # f32 -> 8 rows / vreg sublane group; 16-bit types pack 16 rows.
    return 16 if jnp.dtype(dtype).itemsize == 2 else 8


def _vmem_budget_bytes():
    """~75% of physical VMEM (headroom for compiler scratch; v7x has only 64 MiB)."""
    cap = 128 * 1024 * 1024
    try:
        info = pltpu.get_tpu_info()
        c = getattr(info, "vmem_capacity_bytes", None)
        if c:
            cap = int(c)
    except Exception:
        pass
    return int(0.75 * cap)


def _pick_lane_tile(dim_ru, candidates):
    """Largest MXU-aligned tile with <= ~12.5% padding waste (dim_ru is a 128-multiple)."""
    if dim_ru <= candidates[0]:
        return dim_ru                       # whole dim in one lane-dense tile
    for t in candidates:
        if _round_up(dim_ru, t) - dim_ru <= dim_ru // 8:
            return t
    return 128                              # always exact (dim_ru % 128 == 0)


def _choose_nk_tiles(N, K, itemsize, budget, tm_assume=256, force_k_tiled=False):
    """Pick (tn, tk, single_k) from N/K only, so the weight can be pre-padded once."""
    N_ru = _round_up(N, 128)
    K_ru = _round_up(K, 128)
    tn = _pick_lane_tile(N_ru, (1024, 512, 256, 128))

    if not force_k_tiled:
        # Single-pass K: x tile + full-K weight tile + out tile, double-buffered.
        single_cost = (2 * (tm_assume * K_ru + K_ru * tn + tm_assume * tn) * itemsize
                       + N_ru * 4)
        if single_cost <= budget // 2:
            return tn, K_ru, True

    tk = _pick_lane_tile(K_ru, (512, 256, 128))

    def cost(tn_, tk_):
        return (2 * (tm_assume * tk_ + tk_ * tn_ + tm_assume * tn_) * itemsize
                + tm_assume * tn_ * 4 + N_ru * 4)

    while cost(tn, tk) > budget // 2:
        if tk > 128 and tk >= tn:
            tk = max(128, (tk // 2) // 128 * 128)
        elif tn > 128:
            tn = max(128, (tn // 2) // 128 * 128)
        else:
            break
    return tn, tk, False


# ----------------------------- parameter prep ------------------------------- #

def init_fc_params(key, in_features, out_features):
    """Mirror FullyConnected.reset_parameters: uniform(-stdv, stdv), stdv=1/sqrt(out)."""
    stdv = 1.0 / math.sqrt(out_features)
    kw, kb = jax.random.split(key)
    weight = jax.random.uniform(
        kw, (in_features, out_features), jnp.float32, minval=-stdv, maxval=stdv
    )
    bias = jax.random.uniform(
        kb, (out_features,), jnp.float32, minval=-stdv, maxval=stdv
    )
    return weight, bias


def prepare_fc_params(weight, bias=None, *, compute_dtype=None, force_k_tiled=False):
    """Pad + cast the (K, N) weight and (N,) bias ONCE, outside the per-call path.

    compute_dtype: operand dtype fed to the MXU (e.g. jnp.bfloat16 on v6e/v7x).
                   Accumulation and the bias/epilogue always stay float32.
    """
    K, N = weight.shape
    compute_dtype = jnp.dtype(compute_dtype or weight.dtype)
    itemsize = compute_dtype.itemsize
    budget = _vmem_budget_bytes()

    tn, tk, single_k = _choose_nk_tiles(
        N, K, itemsize, budget, force_k_tiled=force_k_tiled
    )
    K_pad = _round_up(_round_up(K, 128), tk)
    N_pad = _round_up(_round_up(N, 128), tn)

    wp = jnp.zeros((K_pad, N_pad), compute_dtype).at[:K, :N].set(
        weight.astype(compute_dtype)
    )
    b = jnp.zeros((N,), jnp.float32) if bias is None else bias.astype(jnp.float32)
    bp = jnp.zeros((1, N_pad), jnp.float32).at[0, :N].set(b)

    return dict(
        weight=wp, bias=bp, n_out=N, k_in=K,
        tn=tn, tk=tk, single_k=single_k,
        compute_dtype=compute_dtype.name, vmem_budget=budget,
    )


# ----------------------------- forward -------------------------------------- #

def fc_block_forward(x, params):
    """FC_Block forward: LeakyReLU_{0.1}(x @ W + b).  x: (..., K) -> (..., N)."""
    lead = x.shape[:-1]
    x2 = x.reshape(-1, x.shape[-1])
    out = _fc_forward(
        x2, params["weight"], params["bias"],
        n_out=params["n_out"], k_in=params["k_in"],
        tn=params["tn"], tk=params["tk"], single_k=params["single_k"],
        compute_dtype=params["compute_dtype"], vmem_budget=params["vmem_budget"],
    )
    return out.reshape(*lead, params["n_out"])


@functools.partial(jax.jit, static_argnames=(
    "n_out", "k_in", "tn", "tk", "single_k", "compute_dtype", "vmem_budget"))
def _fc_forward(x, wp, bp, *, n_out, k_in, tn, tk, single_k, compute_dtype,
                vmem_budget):
    M, K = x.shape
    assert K == k_in, "x / weight inner dimensions must match"
    K_pad, N_pad = wp.shape
    cdt = jnp.dtype(compute_dtype)
    out_dtype = x.dtype
    itemsize = cdt.itemsize
    sub = _sublane(cdt)

    # tm: MXU-aligned for large M, otherwise just round the tiny batch up to the
    # dtype's packed-sublane multiple (8 for f32, 16 for bf16).
    if M >= 256:
        tm = 256
    elif M >= 128:
        tm = 128
    else:
        tm = _round_up(M, sub)
    M_pad = _round_up(M, tm)

    # Guarantee >=2 "parallel" grid steps when N allows, so both v7x TCs get work.
    tn_c = tn
    while (M_pad // tm) * (N_pad // tn_c) < 2 and tn_c >= 256 and tn_c % 256 == 0:
        tn_c //= 2

    # Only the activation is padded / cast per call (params were pre-padded once).
    xp = x.astype(cdt)
    if M_pad != M or K_pad != K:
        xp = jnp.pad(xp, ((0, M_pad - M), (0, K_pad - K)))

    if single_k:
        est = 2 * (tm * K_pad + K_pad * tn_c + tm * tn_c) * itemsize + N_pad * 4
    else:
        est = (2 * (tm * tk + tk * tn_c + tm * tn_c) * itemsize
               + tm * tn_c * 4 + N_pad * 4)
    vmem_limit = int(min(vmem_budget, max(32 * 1024 * 1024, 2 * est)))

    cost = pl.CostEstimate(
        flops=2 * M_pad * K_pad * N_pad,
        transcendentals=0,
        bytes_accessed=(M_pad * K_pad + K_pad * N_pad + M_pad * N_pad) * itemsize
        + N_pad * 4,
    )

    if single_k:
        grid = (M_pad // tm, N_pad // tn_c)
        out = pl.pallas_call(
            _fc_kernel_single_k,
            out_shape=jax.ShapeDtypeStruct((M_pad, N_pad), out_dtype),
            grid_spec=pltpu.PrefetchScalarGridSpec(
                num_scalar_prefetch=0,
                grid=grid,
                in_specs=[
                    pl.BlockSpec((tm, K_pad), lambda i, j: (i, 0)),    # x tile
                    pl.BlockSpec((K_pad, tn_c), lambda i, j: (0, j)),  # weight tile
                    pl.BlockSpec((1, tn_c), lambda i, j: (0, j)),      # bias sliver
                ],
                out_specs=pl.BlockSpec((tm, tn_c), lambda i, j: (i, j)),
            ),
            compiler_params=pltpu.CompilerParams(
                dimension_semantics=("parallel", "parallel"),
                vmem_limit_bytes=vmem_limit,
            ),
            cost_estimate=cost,
        )(xp, wp, bp)
    else:
        grid = (M_pad // tm, N_pad // tn_c, K_pad // tk)
        out = pl.pallas_call(
            _fc_kernel_k_tiled,
            out_shape=jax.ShapeDtypeStruct((M_pad, N_pad), out_dtype),
            grid_spec=pltpu.PrefetchScalarGridSpec(
                num_scalar_prefetch=0,
                grid=grid,
                in_specs=[
                    pl.BlockSpec((tm, tk), lambda i, j, k: (i, k)),     # x tile
                    pl.BlockSpec((tk, tn_c), lambda i, j, k: (k, j)),   # weight tile
                    # bias index depends only on j -> DMA'd once per output tile
                    # (Pallas skips the copy when the block index is unchanged).
                    pl.BlockSpec((1, tn_c), lambda i, j, k: (0, j)),
                ],
                out_specs=pl.BlockSpec((tm, tn_c), lambda i, j, k: (i, j)),
                scratch_shapes=[pltpu.VMEM((tm, tn_c), jnp.float32)],
            ),
            compiler_params=pltpu.CompilerParams(
                dimension_semantics=("parallel", "parallel", "arbitrary"),
                vmem_limit_bytes=vmem_limit,
            ),
            cost_estimate=cost,
        )(xp, wp, bp)

    if M_pad != M or N_pad != n_out:
        out = out[:M, :n_out]
    return out


# ----------------------------- reference & demo ----------------------------- #

def _reference(x, w, b):
    y = jnp.matmul(x.astype(jnp.float32), w.astype(jnp.float32),
                   precision=jax.lax.Precision.HIGHEST) + b
    return jnp.where(y >= 0, y, NEG_SLOPE * y)


if __name__ == "__main__":
    key = jax.random.PRNGKey(0)

    # (M, K, N, compute_dtype, force_k_tiled, atol)
    cases = [
        (8, 128, 128, jnp.float32, False, 2e-3),    # single-pass, one MXU tile
        (8, 2304, 256, jnp.float32, True, 2e-3),    # K-tiled reduction path
        (5, 100, 70, jnp.float32, False, 2e-3),     # ragged shapes -> pad + slice
        (16, 256, 128, jnp.bfloat16, False, 1e-1),  # bf16-operand path (f32 accum)
    ]

    ok = True
    for idx, (M, K, N, cdt, force, tol) in enumerate(cases):
        key, kx, kp = jax.random.split(key, 3)
        x = jax.random.normal(kx, (M, K), jnp.float32)
        weight, bias = init_fc_params(kp, K, N)

        params = prepare_fc_params(weight, bias, compute_dtype=cdt,
                                   force_k_tiled=force)
        out = jax.block_until_ready(fc_block_forward(x, params))

        ref = _reference(x, weight, bias)
        err = float(jnp.max(jnp.abs(out.astype(jnp.float32) - ref)))
        if out.shape != ref.shape or err > tol:
            ok = False
            print(f"case {idx} (M={M}, K={K}, N={N}, dtype={jnp.dtype(cdt).name}) "
                  f"mismatch: max abs err = {err}")

    assert ok, "mismatch vs reference"
    print("KERNEL_OK")
</pallas_src>

<mosaic_0001>
module attributes {stable_mosaic.version = 11 : i64} {
  func.func @_fc_kernel_single_k(%arg0: i32, %arg1: i32, %arg2: memref<8x128xf32, #tpu.memory_space<vmem>>, %arg3: memref<128x128xf32, #tpu.memory_space<vmem>>, %arg4: memref<1x128xf32, #tpu.memory_space<vmem>>, %arg5: memref<8x128xf32, #tpu.memory_space<vmem>>) attributes {dimension_semantics = [#tpu.dimension_semantics<parallel>, #tpu.dimension_semantics<parallel>], iteration_bounds = array<i64: 1, 1>, scalar_prefetch = 0 : i64, scratch_operands = 0 : i64, tpu.core_type = #tpu.core_type<tc>, window_params = [{transform_indices = @transform_0, window_bounds = array<i64: 8, 128>}, {transform_indices = @transform_1, window_bounds = array<i64: 128, 128>}, {transform_indices = @transform_2, window_bounds = array<i64: 1, 128>}, {transform_indices = @transform_3, window_bounds = array<i64: 8, 128>}]} {
    %c0 = arith.constant 0 : index
    %c0_0 = arith.constant 0 : index
    %0 = vector.load %arg2[%c0, %c0_0] : memref<8x128xf32, #tpu.memory_space<vmem>>, vector<8x128xf32>
    %c0_1 = arith.constant 0 : index
    %c0_2 = arith.constant 0 : index
    %1 = vector.load %arg3[%c0_1, %c0_2] : memref<128x128xf32, #tpu.memory_space<vmem>>, vector<128x128xf32>
    %cst = arith.constant dense<0.000000e+00> : vector<8x128xf32>
    %2 = tpu.matmul %0, %1, %cst {dimension_numbers = #tpu.dot_dimension_numbers<[1], [0], [0], [1], [0, 0, 1, 1], [], []>} : vector<8x128xf32>, vector<128x128xf32>, vector<8x128xf32> -> vector<8x128xf32>
    %c0_3 = arith.constant 0 : index
    %c0_4 = arith.constant 0 : index
    %3 = vector.load %arg4[%c0_3, %c0_4] : memref<1x128xf32, #tpu.memory_space<vmem>>, vector<1x128xf32>
    %4 = vector.broadcast %3 : vector<1x128xf32> to vector<8x128xf32>
    %5 = arith.addf %2, %4 : vector<8x128xf32>
    %cst_5 = arith.constant 1.000000e-01 : f32
    %6 = vector.broadcast %cst_5 : f32 to vector<8x128xf32>
    %7 = arith.mulf %6, %5 : vector<8x128xf32>
    %8 = arith.maximumf %5, %7 : vector<8x128xf32>
    %c0_6 = arith.constant 0 : index
    %c0_7 = arith.constant 0 : index
    %9 = vector.load %arg5[%c0_6, %c0_7] : memref<8x128xf32, #tpu.memory_space<vmem>>, vector<8x128xf32>
    tpu.vector_store %arg5[%c0_6, %c0_7], %8 {strides = array<i32>} : memref<8x128xf32, #tpu.memory_space<vmem>>, vector<8x128xf32>,
    return
  }
  func.func @transform_0(%arg0: i32, %arg1: i32) -> (i32, i32) {
    %c0_i32 = arith.constant 0 : i32
    %c0_i32_0 = arith.constant 0 : i32
    return %arg0, %c0_i32 : i32, i32
  }
  func.func @transform_1(%arg0: i32, %arg1: i32) -> (i32, i32) {
    %c0_i32 = arith.constant 0 : i32
    %c0_i32_0 = arith.constant 0 : i32
    return %c0_i32, %arg1 : i32, i32
  }
  func.func @transform_2(%arg0: i32, %arg1: i32) -> (i32, i32) {
    %c0_i32 = arith.constant 0 : i32
    %c0_i32_0 = arith.constant 0 : i32
    return %c0_i32, %arg1 : i32, i32
  }
  func.func @transform_3(%arg0: i32, %arg1: i32) -> (i32, i32) {
    %c0_i32 = arith.constant 0 : i32
    return %arg0, %arg1 : i32, i32
  }
}

</mosaic_0001>

<llo_original>
// kernel: _fc_forward.1
$region0: #{_fc_forward.1}
  #allocation0 [shape = 'u32[]', space=smem, size = 0x4, offset = 0x4, fixed_abs, tag = 'smem constant byte address 0x4 - core index']
  #allocation1 [shape = 'u32[144,128]{1,0:T(1,128)}', space=vmem, size = 0x12000, scoped, tag = 'internal scratch']
  %s0 = inlined_call_operand.hbm [shape: f32[8,128], index: 0, kind: input, shape index: {}]
  %s1 = inlined_call_operand.hbm [shape: f32[128,128], index: 1, kind: input, shape index: {}]
  %s2 = inlined_call_operand.vmem [shape: f32[1,128], index: 2, kind: input, shape index: {}]
  %s3 = inlined_call_operand.hbm [shape: f32[8,128], index: 3, kind: output, shape index: {}]
  %s4 = sld [smem:[#allocation0]]
  $region30: #{_fc_forward.1} parent=0
    _
  %s6 = ssub.s32 1, %s4
  %s7 = scalar_select 0, %s6, %s4
  $region1: #{_fc_forward.1} parent=0
    #allocation2 [shape = 'u8[4096]{0}', space=vmem, size = 0x1000, scoped, tag = 'input window, operand 0, single buffered']
    #allocation3 [shape = 's32[1]{0}', space=sflag, size = 0x4, scoped, tag = 'scoped memory for _fc_forward.1']
    #allocation4 [shape = 's32[1]{0}', space=sflag, size = 0x4, scoped, tag = 'scoped memory for _fc_forward.1']
    #allocation5 [shape = 'u8[65536]{0}', space=vmem, size = 0x10000, scoped, tag = 'input window, operand 1, single buffered']
    #allocation6 [shape = 's32[1]{0}', space=sflag, size = 0x4, scoped, tag = 'scoped memory for _fc_forward.1']
    #allocation7 [shape = 'u8[4096]{0}', space=vmem, size = 0x1000, scoped, tag = 'output window, operand 0, single buffered']
    %8 = vsyncpa [#allocation3], 0
    %9 = vsyncpa [#allocation6], 0
    %10 = vsyncpa [#allocation4], 0
    // Predicated region
    $region2: #{_fc_forward.1} parent=1 // pred_check
      _
    $region3: #{_fc_forward.1} parent=1 // pred_check_branch
      %12 = sbr.rel (0) target = $region5
    $region4: #{_fc_forward.1} parent=1 // pred_region
      %s14 = ssub.s32 128, 128
      %15 = vsyncadd [#allocation3], %s14
      %s17 = sshll.u32 [#allocation2], 4
      %s18 = int_to_ptr.vmem [resolvable:$true] %s17
      %20 = dma.hbm_to_vmem [thread:$0]  %s0, 128, %s18, [#allocation3]
    $region5: #{_fc_forward.1} parent=1 // pred_fallthru
      _
    // Predicated region
    $region6: #{_fc_forward.1} parent=1 // pred_check
      _
    $region7: #{_fc_forward.1} parent=1 // pred_check_branch
      %22 = sbr.rel (0) target = $region9
    $region8: #{_fc_forward.1} parent=1 // pred_region
      %s24 = ssub.s32 2048, 2048
      %25 = vsyncadd [#allocation6], %s24
      %s26 = sshll.u32 [#allocation5], 4
      %s27 = int_to_ptr.vmem [resolvable:$true] %s26
      %32 = dma.hbm_to_vmem [thread:$0]  %s1, 2048, %s27, [#allocation6], 128, 128, 8
    $region9: #{_fc_forward.1} parent=1 // pred_fallthru
      _
    // Predicated region
    $region10: #{_fc_forward.1} parent=1 // pred_check
      _
    $region11: #{_fc_forward.1} parent=1 // pred_check_branch
      %34 = sbr.rel (0) target = $region13
    $region12: #{_fc_forward.1} parent=1 // pred_region
      _
    $region13: #{_fc_forward.1} parent=1 // pred_fallthru
      _
    // Predicated region
    $region14: #{_fc_forward.1} parent=1 // pred_check
      _
    $region15: #{_fc_forward.1} parent=1 // pred_check_branch
      %36 = sbr.rel (0) target = $region17
    $region16: #{_fc_forward.1} parent=1 // pred_region
      %37 = dma.done [#allocation3], 128
    $region17: #{_fc_forward.1} parent=1 // pred_fallthru
      _
    // Predicated region
    $region18: #{_fc_forward.1} parent=1 // pred_check
      _
    $region19: #{_fc_forward.1} parent=1 // pred_check_branch
      %39 = sbr.rel (0) target = $region21
    $region20: #{_fc_forward.1} parent=1 // pred_region
      %40 = dma.done [#allocation6], 2048
    $region21: #{_fc_forward.1} parent=1 // pred_fallthru
      _
    %v41 = vld [vmem:[#allocation2] sm:$0xff]
    %v42 = vld [vmem:[#allocation5] sm:$0xff]
    %v43 = vld [vmem:[#allocation5 + $0x8] sm:$0xff]
    %v44 = vld [vmem:[#allocation5 + $0x10] sm:$0xff]
    %v45 = vld [vmem:[#allocation5 + $0x18] sm:$0xff]
    %v46 = vld [vmem:[#allocation5 + $0x20] sm:$0xff]
    %v47 = vld [vmem:[#allocation5 + $0x28] sm:$0xff]
    %v48 = vld [vmem:[#allocation5 + $0x30] sm:$0xff]
    %v49 = vld [vmem:[#allocation5 + $0x38] sm:$0xff]
    %v50 = vld [vmem:[#allocation5 + $0x40] sm:$0xff]
    %v51 = vld [vmem:[#allocation5 + $0x48] sm:$0xff]
    %v52 = vld [vmem:[#allocation5 + $0x50] sm:$0xff]
    %v53 = vld [vmem:[#allocation5 + $0x58] sm:$0xff]
    %v54 = vld [vmem:[#allocation5 + $0x60] sm:$0xff]
    %v55 = vld [vmem:[#allocation5 + $0x68] sm:$0xff]
    %v56 = vld [vmem:[#allocation5 + $0x70] sm:$0xff]
    %v57 = vld [vmem:[#allocation5 + $0x78] sm:$0xff]
    %v58 = vld [vmem:[%s2] sm:$0x1]
    %v60 = vlaneseq
    %v61 = vshrl.u32 %v60, 7
    %v62 = vsub.s32 0, %v61
    %v63 = vrot.slane %v58, %v62
    %65 = vmatprep.subr.mxu0 0.0
    %66 = vmatpush1.msra.mxu0 %v42
    %67 = vmatprep.subr.mxu0 0.0
    %68 = vmatpush1.msra.mxu0 %v43
    %69 = vmatprep.subr.mxu0 0.0
    %70 = vmatpush1.msra.mxu0 %v44
    %71 = vmatprep.subr.mxu0 0.0
    %72 = vmatpush1.msra.mxu0 %v45
    %73 = vmatprep.subr.mxu0 0.0
    %74 = vmatpush1.msra.mxu0 %v46
    %75 = vmatprep.subr.mxu0 0.0
    %76 = vmatpush1.msra.mxu0 %v47
    %77 = vmatprep.subr.mxu0 0.0
    %78 = vmatpush1.msra.mxu0 %v48
    %79 = vmatprep.subr.mxu0 0.0
    %80 = vmatpush1.msra.mxu0 %v49
    %81 = vmatprep.subr.mxu0 0.0
    %82 = vmatpush1.msra.mxu0 %v50
    %83 = vmatprep.subr.mxu0 0.0
    %84 = vmatpush1.msra.mxu0 %v51
    %85 = vmatprep.subr.mxu0 0.0
    %86 = vmatpush1.msra.mxu0 %v52
    %87 = vmatprep.subr.mxu0 0.0
    %88 = vmatpush1.msra.mxu0 %v53
    %89 = vmatprep.subr.mxu0 0.0
    %90 = vmatpush1.msra.mxu0 %v54
    %91 = vmatprep.subr.mxu0 0.0
    %92 = vmatpush1.msra.mxu0 %v55
    %93 = vmatprep.subr.mxu0 0.0
    %94 = vmatpush1.msra.mxu0 %v56
    %95 = vmatprep.subr.mxu0 0.0
    %96 = vmatpush1.msra.mxu0 %v57
    %97 = vmatprep.subr.mxu0 0.0
    %98 = vmatpush1.msra.mxu0 0.0
    %99 = vmatprep.subr.mxu0 0.0
    %100 = vmatpush1.msra.mxu0 0.0
    %101 = vmatprep.subr.mxu0 0.0
    %102 = vmatpush1.msra.mxu0 0.0
    %103 = vmatprep.subr.mxu0 0.0
    %104 = vmatpush1.msra.mxu0 0.0
    %105 = vmatprep.subr.mxu0 0.0
    %106 = vmatpush1.msra.mxu0 0.0
    %107 = vmatprep.subr.mxu0 0.0
    %108 = vmatpush1.msra.mxu0 0.0
    %109 = vmatprep.subr.mxu0 0.0
    %110 = vmatpush1.msra.mxu0 0.0
    %111 = vmatprep.subr.mxu0 0.0
    %112 = vmatpush1.msra.mxu0 0.0
    %113 = vmatprep.subr.mxu0 0.0
    %114 = vmatpush1.msra.mxu0 0.0
    %115 = vmatprep.subr.mxu0 0.0
    %116 = vmatpush1.msra.mxu0 0.0
    %117 = vmatprep.subr.mxu0 0.0
    %118 = vmatpush1.msra.mxu0 0.0
    %119 = vmatprep.subr.mxu0 0.0
    %120 = vmatpush1.msra.mxu0 0.0
    %121 = vmatprep.subr.mxu0 0.0
    %122 = vmatpush1.msra.mxu0 0.0
    %123 = vmatprep.subr.mxu0 0.0
    %124 = vmatpush1.msra.mxu0 0.0
    %125 = vmatprep.subr.mxu0 0.0
    %126 = vmatpush1.msra.mxu0 0.0
    %127 = vmatprep.subr.mxu0 0.0
    %128 = vmatpush1.msra.mxu0 0.0
    %129 = vmatprep.mubr.f32.mxu0 0.0
    %130 = vmatmul.mubr.f32.gmra.mrb[0].mxu0 %v41
    %v131 = vpop.f32.mrb[0].mxu0
    %v132 = vadd.f32 %v63, %v131
    %v133 = vpop.f32.mrb[0].mxu0
    %134 = vdwg.mxu0
    %v135 = vmul.f32 %v132, 0.1
    %v136 = vmax.f32 %v132, %v135
    %137 = vst [vmem:[#allocation7] sm:$0xff] %v136
    // Predicated region
    $region22: #{_fc_forward.1} parent=1 // pred_check
      _
    $region23: #{_fc_forward.1} parent=1 // pred_check_branch
      %139 = sbr.rel (0) target = $region25
    $region24: #{_fc_forward.1} parent=1 // pred_region
      %s141 = ssub.s32 128, 128
      %142 = vsyncadd [#allocation4], %s141
      %s144 = sshll.u32 [#allocation7], 4
      %s145 = int_to_ptr.vmem [resolvable:$true] %s144
      %147 = dma.vmem_to_hbm [thread:$0]  %s145, 128, %s3, [#allocation4]
    $region25: #{_fc_forward.1} parent=1 // pred_fallthru
      _
    // Predicated region
    $region26: #{_fc_forward.1} parent=1 // pred_check
      _
    $region27: #{_fc_forward.1} parent=1 // pred_check_branch
      %149 = sbr.rel (0) target = $region29
    $region28: #{_fc_forward.1} parent=1 // pred_region
      %150 = dma.done [#allocation4], 128
    $region29: #{_fc_forward.1} parent=1 // pred_fallthru
      _
    %151 = vsyncpa [#allocation3], 1
    %152 = vsyncpa [#allocation6], 1
    %153 = vsyncpa [#allocation4], 1

</llo_original>
